<compile_context>
chip_gen: v5e
topology: v5e:2x2
jax: 0.10.0
libtpu: 0.0.40
codegen_flags: <defaults>
</compile_context>

<pallas_src>
import math
from functools import partial

import jax
import jax.numpy as jnp
from jax.experimental import pallas as pl
from jax.experimental.pallas import tpu as pltpu


def _round_up(n, m):
    return ((n + m - 1) // m) * m


def _pick_block_b(B, T):
    """Batch elements per grid step: fill ~256 MXU rows, divide B evenly,
    and keep >= 2 grid steps when possible (v7x has 2 TensorCores)."""
    bb = max(1, min(B, 256 // max(T, 1)))
    while B % bb:
        bb -= 1
    if B >= 2 and B // bb < 2:
        bb = max(1, bb // 2)
        while B % bb:
            bb -= 1
    return bb


def causal_attn_kernel(x_ref, w_ref, o_ref, *, scale, d_pad):
    # x_ref: (Bb, T, d_in)   w_ref: (d_in, 3*d_pad)   o_ref: (Bb, T, d_pad)
    Bb, T, d_in = x_ref.shape
    mm_dtype = x_ref.dtype  # matmul input dtype (f32 or bf16); accum is f32

    # Fused QKV projection: one MXU matmul over (Bb*T, d_in) x (d_in, 3*d_pad)
    x2d = x_ref[...].reshape(Bb * T, d_in)
    qkv = jnp.dot(x2d, w_ref[...], preferred_element_type=jnp.float32)

    # 128-aligned lane slices; fold the 1/sqrt(d_out) scale into q.
    q = (qkv[:, :d_pad] * scale).astype(mm_dtype).reshape(Bb, T, d_pad)
    k = qkv[:, d_pad:2 * d_pad].astype(mm_dtype).reshape(Bb, T, d_pad)
    v = qkv[:, 2 * d_pad:].astype(mm_dtype).reshape(Bb, T, d_pad)

    # Transposed scores s_T[b, key, query] = k . q  (contract last dims; no
    # explicit transpose -- the MXU handles the transposed-RHS contraction).
    s_T = jnp.einsum("bkd,bqd->bkq", k, q,
                     preferred_element_type=jnp.float32)

    # Causal mask: masked where key index > query index (== triu(..., 1) in
    # the reference's (query, key) layout).  -inf is safe: every key row has
    # at least the diagonal query unmasked.
    key_idx = jax.lax.broadcasted_iota(jnp.int32, (T, T), 0)
    qry_idx = jax.lax.broadcasted_iota(jnp.int32, (T, T), 1)
    s_T = jnp.where((key_idx > qry_idx)[None, :, :], -jnp.inf, s_T)

    # Reference softmax over dim=1 (the QUERY axis) -> last axis of s_T, so
    # the max/sum reductions stay on the lane axis.  Softmax math in f32.
    m = jnp.max(s_T, axis=-1, keepdims=True)
    e = jnp.exp(s_T - m)
    denom = jnp.sum(e, axis=-1, keepdims=True)
    inv = pl.reciprocal(denom, approx=True)      # EUP slot
    inv = inv * (2.0 - denom * inv)              # one Newton step -> ~f32 exact
    attn_T = e * inv

    # TODO(synk): nn.Dropout on the attention weights is stochastic in train
    # mode; implemented here as the deterministic eval-mode identity.

    # out[b, q, d] = sum_k attn_T[b, k, q] * v[b, k, d]  (MXU absorbs the
    # layout flip; f32 accumulation).
    out = jnp.einsum("bkq,bkd->bqd", attn_T.astype(mm_dtype), v,
                     preferred_element_type=jnp.float32)
    o_ref[...] = out.astype(o_ref.dtype)


def causal_attention(x, wq_t, wk_t, wv_t, *, block_b=None):
    """x: (B, T, d_in); w*_t: (d_in, d_out) pre-transposed Linear weights.

    Weights / x may be float32 or bfloat16; MXU matmuls run in that dtype
    with f32 accumulation.  Returns (B, T, d_out) in x.dtype.
    """
    B, T, d_in = x.shape
    d_out = wq_t.shape[1]
    scale = 1.0 / math.sqrt(d_out)          # uses the TRUE d_out, not the pad
    d_pad = _round_up(d_out, 128)           # lane-dense output / weight N dim

    if block_b is None:
        block_b = _pick_block_b(B, T)
    assert B % block_b == 0

    # Fuse + zero-pad the three projection weights: (d_in, 3*d_pad).
    # Zero pad columns of Wq/Wk do not change q.k; zero pad columns of Wv
    # only produce output columns that are sliced off below.
    def pad_w(w):
        return jnp.pad(w, ((0, 0), (0, d_pad - d_out)))

    w_fused = jnp.concatenate(
        [pad_w(wq_t), pad_w(wk_t), pad_w(wv_t)], axis=1).astype(x.dtype)

    kernel = partial(causal_attn_kernel, scale=scale, d_pad=d_pad)

    out_padded = pl.pallas_call(
        kernel,
        out_shape=jax.ShapeDtypeStruct((B, T, d_pad), x.dtype),
        grid=(B // block_b,),
        in_specs=[
            pl.BlockSpec((block_b, T, d_in), lambda b: (b, 0, 0)),
            pl.BlockSpec((d_in, 3 * d_pad), lambda b: (0, 0)),
        ],
        out_specs=pl.BlockSpec((block_b, T, d_pad), lambda b: (b, 0, 0)),
        compiler_params=pltpu.CompilerParams(
            dimension_semantics=("parallel",)),
    )(x, w_fused)

    return out_padded[:, :, :d_out]


def causal_attention_ref(x, wq_t, wk_t, wv_t):
    """Pure-JAX reference mirroring the PyTorch forward exactly."""
    d_out = wq_t.shape[1]
    q = x @ wq_t
    k = x @ wk_t
    v = x @ wv_t
    s = jnp.einsum("btd,bsd->bts", q, k)
    T = s.shape[1]
    mask = jnp.triu(jnp.ones((T, T), dtype=bool), k=1)
    s = jnp.where(mask[None, :, :], -jnp.inf, s)
    attn = jax.nn.softmax(s / math.sqrt(d_out), axis=1)   # dim=1, as in reference
    return jnp.einsum("bts,bsd->btd", attn, v)


if __name__ == "__main__":
    # Shapes consistent with the module: batch=2, seq=context_length=8,
    # d_in=32, d_out=32, qkv_bias=False, dropout=0.1 (identity in eval).
    B, T, D_IN, D_OUT = 2, 8, 32, 32

    key = jax.random.PRNGKey(0)
    kx, kq, kk, kv = jax.random.split(key, 4)

    x = jax.random.normal(kx, (B, T, D_IN), dtype=jnp.float32)

    # Deterministic Linear-style init (uniform in +/- 1/sqrt(d_in)),
    # stored pre-transposed as (d_in, d_out).
    bound = 1.0 / math.sqrt(D_IN)
    wq_t = jax.random.uniform(kq, (D_IN, D_OUT), jnp.float32, -bound, bound)
    wk_t = jax.random.uniform(kk, (D_IN, D_OUT), jnp.float32, -bound, bound)
    wv_t = jax.random.uniform(kv, (D_IN, D_OUT), jnp.float32, -bound, bound)

    # --- float32 path ---
    out = causal_attention(x, wq_t, wk_t, wv_t)
    out = jax.block_until_ready(out)
    ref = causal_attention_ref(x, wq_t, wk_t, wv_t)
    assert out.shape == (B, T, D_OUT)
    assert jnp.allclose(out, ref, atol=1e-3, rtol=1e-3), "f32 mismatch vs JAX ref"

    # --- bfloat16 path (MXU-native matmul inputs, f32 accumulation/softmax) ---
    xb = x.astype(jnp.bfloat16)
    wqb = wq_t.astype(jnp.bfloat16)
    wkb = wk_t.astype(jnp.bfloat16)
    wvb = wv_t.astype(jnp.bfloat16)
    out_bf16 = causal_attention(xb, wqb, wkb, wvb)
    out_bf16 = jax.block_until_ready(out_bf16)
    ref_bf16 = causal_attention_ref(xb.astype(jnp.float32),
                                    wqb.astype(jnp.float32),
                                    wkb.astype(jnp.float32),
                                    wvb.astype(jnp.float32))
    assert out_bf16.shape == (B, T, D_OUT)
    assert jnp.allclose(out_bf16.astype(jnp.float32), ref_bf16,
                        atol=3e-2, rtol=3e-2), "bf16 mismatch vs JAX ref"

    print("KERNEL_OK")
</pallas_src>

<mosaic_0001>
module attributes {stable_mosaic.version = 11 : i64} {
  func.func @causal_attn_kernel(%arg0: i32, %arg1: memref<1x8x32xf32, #tpu.memory_space<vmem>>, %arg2: memref<32x384xf32, #tpu.memory_space<vmem>>, %arg3: memref<1x8x128xf32, #tpu.memory_space<vmem>>) attributes {dimension_semantics = [#tpu.dimension_semantics<parallel>], iteration_bounds = array<i64: 2>, scalar_prefetch = 0 : i64, scratch_operands = 0 : i64, tpu.core_type = #tpu.core_type<tc>, window_params = [{transform_indices = @transform_0, window_bounds = array<i64: 1, 8, 32>}, {pipeline_mode = #tpu.pipeline_mode<synchronous>, transform_indices = @transform_1, window_bounds = array<i64: 32, 384>}, {transform_indices = @transform_2, window_bounds = array<i64: 1, 8, 128>}]} {
    %c0 = arith.constant 0 : index
    %c0_0 = arith.constant 0 : index
    %c0_1 = arith.constant 0 : index
    %0 = vector.load %arg1[%c0, %c0_0, %c0_1] : memref<1x8x32xf32, #tpu.memory_space<vmem>>, vector<1x8x32xf32>
    %1 = vector.shape_cast %0 : vector<1x8x32xf32> to vector<8x32xf32>
    %c0_2 = arith.constant 0 : index
    %c0_3 = arith.constant 0 : index
    %2 = vector.load %arg2[%c0_2, %c0_3] : memref<32x384xf32, #tpu.memory_space<vmem>>, vector<32x384xf32>
    %cst = arith.constant dense<0.000000e+00> : vector<8x384xf32>
    %3 = tpu.matmul %1, %2, %cst {dimension_numbers = #tpu.dot_dimension_numbers<[1], [0], [0], [1], [0, 0, 1, 1], [], []>} : vector<8x32xf32>, vector<32x384xf32>, vector<8x384xf32> -> vector<8x384xf32>
    %4 = vector.extract_strided_slice %3 {offsets = [0, 0], sizes = [8, 128], strides = [1, 1]} : vector<8x384xf32> to vector<8x128xf32>
    %cst_4 = arith.constant 0.176776692 : f32
    %5 = vector.broadcast %cst_4 : f32 to vector<8x128xf32>
    %6 = arith.mulf %4, %5 : vector<8x128xf32>
    %7 = vector.shape_cast %6 : vector<8x128xf32> to vector<1x8x128xf32>
    %8 = vector.extract_strided_slice %3 {offsets = [0, 128], sizes = [8, 128], strides = [1, 1]} : vector<8x384xf32> to vector<8x128xf32>
    %9 = vector.shape_cast %8 : vector<8x128xf32> to vector<1x8x128xf32>
    %10 = vector.extract_strided_slice %3 {offsets = [0, 256], sizes = [8, 128], strides = [1, 1]} : vector<8x384xf32> to vector<8x128xf32>
    %11 = vector.shape_cast %10 : vector<8x128xf32> to vector<1x8x128xf32>
    "tpu.trace_start"() <{level = 10 : i32, message = "bkd,bqd->bkq"}> : () -> ()
    %cst_5 = arith.constant dense<0.000000e+00> : vector<1x8x8xf32>
    %12 = tpu.matmul %9, %7, %cst_5 {dimension_numbers = #tpu.dot_dimension_numbers<[2], [2], [1], [1], [0, 0, 0, 1, 1, 1], [0], [0]>} : vector<1x8x128xf32>, vector<1x8x128xf32>, vector<1x8x8xf32> -> vector<1x8x8xf32>
    "tpu.trace_stop"() : () -> ()
    %13 = tpu.iota {dimensions = array<i32: 0>} : vector<8x8xi32>
    %14 = tpu.iota {dimensions = array<i32: 1>} : vector<8x8xi32>
    %15 = arith.cmpi sgt, %13, %14 : vector<8x8xi32>
    %16 = vector.shape_cast %15 : vector<8x8xi1> to vector<1x8x8xi1>
    %cst_6 = arith.constant 0xFF800000 : f32
    %17 = vector.broadcast %cst_6 : f32 to vector<1x8x8xf32>
    %18 = arith.select %16, %17, %12 : vector<1x8x8xi1>, vector<1x8x8xf32>
    %cst_7 = arith.constant dense<0xFF800000> : vector<1x8xf32>
    %19 = vector.multi_reduction <maximumf>, %18, %cst_7 [2] : vector<1x8x8xf32> to vector<1x8xf32>
    %20 = vector.shape_cast %19 : vector<1x8xf32> to vector<1x8x1xf32>
    %21 = vector.broadcast %20 : vector<1x8x1xf32> to vector<1x8x8xf32>
    %22 = arith.subf %18, %21 : vector<1x8x8xf32>
    %23 = math.exp %22 : vector<1x8x8xf32>
    %cst_8 = arith.constant dense<0.000000e+00> : vector<1x8xf32>
    %24 = vector.multi_reduction <add>, %23, %cst_8 [2] : vector<1x8x8xf32> to vector<1x8xf32>
    %25 = vector.shape_cast %24 : vector<1x8xf32> to vector<1x8x1xf32>
    %26 = tpu.reciprocal %25 {approx = true} : vector<1x8x1xf32> -> vector<1x8x1xf32>
    %27 = arith.mulf %25, %26 : vector<1x8x1xf32>
    %cst_9 = arith.constant 2.000000e+00 : f32
    %28 = vector.broadcast %cst_9 : f32 to vector<1x8x1xf32>
    %29 = arith.subf %28, %27 : vector<1x8x1xf32>
    %30 = arith.mulf %26, %29 : vector<1x8x1xf32>
    %31 = vector.broadcast %30 : vector<1x8x1xf32> to vector<1x8x8xf32>
    %32 = arith.mulf %23, %31 : vector<1x8x8xf32>
    "tpu.trace_start"() <{level = 10 : i32, message = "bkq,bkd->bqd"}> : () -> ()
    %cst_10 = arith.constant dense<0.000000e+00> : vector<1x8x128xf32>
    %33 = tpu.matmul %32, %11, %cst_10 {dimension_numbers = #tpu.dot_dimension_numbers<[1], [1], [2], [2], [0, 0, 0, 2, 1, 2], [0], [0]>} : vector<1x8x8xf32>, vector<1x8x128xf32>, vector<1x8x128xf32> -> vector<1x8x128xf32>
    "tpu.trace_stop"() : () -> ()
    %c0_11 = arith.constant 0 : index
    %c0_12 = arith.constant 0 : index
    %c0_13 = arith.constant 0 : index
    %34 = vector.load %arg3[%c0_11, %c0_12, %c0_13] : memref<1x8x128xf32, #tpu.memory_space<vmem>>, vector<1x8x128xf32>
    tpu.vector_store %arg3[%c0_11, %c0_12, %c0_13], %33 {strides = array<i32>} : memref<1x8x128xf32, #tpu.memory_space<vmem>>, vector<1x8x128xf32>,
    return
  }
  func.func @transform_0(%arg0: i32) -> (i32, i32, i32) {
    %c0_i32 = arith.constant 0 : i32
    %c0_i32_0 = arith.constant 0 : i32
    %c0_i32_1 = arith.constant 0 : i32
    return %arg0, %c0_i32, %c0_i32_0 : i32, i32, i32
  }
  func.func @transform_1(%arg0: i32) -> (i32, i32) {
    %c0_i32 = arith.constant 0 : i32
    %c0_i32_0 = arith.constant 0 : i32
    %c0_i32_1 = arith.constant 0 : i32
    return %c0_i32, %c0_i32_0 : i32, i32
  }
  func.func @transform_2(%arg0: i32) -> (i32, i32, i32) {
    %c0_i32 = arith.constant 0 : i32
    %c0_i32_0 = arith.constant 0 : i32
    %c0_i32_1 = arith.constant 0 : i32
    return %arg0, %c0_i32, %c0_i32_0 : i32, i32, i32
  }
}

</mosaic_0001>

<llo_original>
// kernel: tpu_custom_call.1
$region0: #{tpu_custom_call.1}
  #allocation0 [shape = 'u32[]', space=smem, size = 0x4, offset = 0x4, fixed_abs, tag = 'smem constant byte address 0x4 - core index']
  #allocation1 [shape = 'u32[72,128]{1,0:T(1,128)}', space=vmem, size = 0x9000, scoped, tag = 'internal scratch']
  %s0 = inlined_call_operand.hbm [shape: f32[2,8,32], index: 0, kind: input, shape index: {}]
  %s1 = inlined_call_operand.hbm [shape: f32[32,384], index: 1, kind: input, shape index: {}]
  %s2 = inlined_call_operand.hbm [shape: f32[2,8,128], index: 2, kind: output, shape index: {}]
  %s3 = sld [smem:[#allocation0]]
  $region49: #{tpu_custom_call.1} parent=0
    _
  %s5 = ssub.s32 1, %s3
  %s6 = scalar_select 0, %s5, %s3
  $region1: #{tpu_custom_call.1} parent=0
    #allocation2 [shape = 'u8[8192]{0}', space=vmem, size = 0x2000, scoped, tag = 'input window, operand 0']
    #allocation3 [shape = 's32[2]{0}', space=sflag, size = 0x8, scoped, tag = 'scoped memory for tpu_custom_call.1']
    #allocation4 [shape = 's32[2]{0}', space=sflag, size = 0x8, scoped, tag = 'scoped memory for tpu_custom_call.1']
    #allocation5 [shape = 'u8[49152]{0}', space=vmem, size = 0xc000, scoped, tag = 'input window, operand 1, single buffered']
    #allocation6 [shape = 's32[1]{0}', space=sflag, size = 0x4, scoped, tag = 'scoped memory for tpu_custom_call.1']
    #allocation7 [shape = 'u8[8192]{0}', space=vmem, size = 0x2000, scoped, tag = 'output window, operand 0']
    %7 = vsyncpa [#allocation3], 0
    %s8 = scalar_lea.sflag [#allocation3], 1
    %9 = vsyncpa %s8, 0
    %10 = vsyncpa [#allocation6], 0
    %11 = vsyncpa [#allocation4], 0
    %s12 = scalar_lea.sflag [#allocation4], 1
    %13 = vsyncpa %s12, 0
    loop: start=0, step=1, limit=4
    $region2: #{tpu_custom_call.1} parent=1 // loop_pre_header
      _
    $region3: #{tpu_custom_call.1} parent=1 // loop_header
      %s15 = sphi 0, %s19
      %p16 = scmp.ge.s32.totalorder %s15, 4
      %s25 = sphi 0, %s27
      %s28 = sphi 0, %s25
      %s29 = sphi 0, %s28
      %s45 = sphi 0, %s29
      %s49 = sphi 0, %s49
      %s51 = sphi 0, %s49
      %s52 = sphi 0, %s51
      %s66 = sphi 0, %s52
      %s72 = sphi 0, %s74
      %s75 = sphi 0, %s72
      %s76 = sphi 0, %s75
      %s92 = sphi 0, %s76
    $region4: #{tpu_custom_call.1} parent=1 // loop_header_branch
      %18 = sbr.rel (%p16) target = $region8
    $region5: #{tpu_custom_call.1} parent=1 // loop_body
      %s20 = ssub.s32 %s15, 1
      %s21 = ssub.s32 %s15, 2
      %s22 = sadd.s32 %s15, 1
      %s23 = ssub.s32 %s15, %s22
      %p24 = scmp.eq.s32.totalorder %s23, 0
      %s26 = sadd.s32 %s25, 1
      %s27 = scalar_select %p24, %s25, %s26
      %p30 = pneg %p24
      %p31 = scmp.eq.s32.totalorder %s15, 1
      %p32 = por %p30, %p31
      %p33 = scmp.ne.s32.totalorder %s25, %s28
      %p34 = scmp.eq.s32.totalorder %s15, 0
      %p35 = por %p33, %p34
      %p36 = scmp.ne.s32.totalorder %s25, %s28
      %p37 = scmp.eq.s32.totalorder %s20, 1
      %p38 = por %p36, %p37
      %p39 = scmp.ne.s32.totalorder %s28, %s29
      %p40 = scmp.eq.s32.totalorder %s20, 0
      %p41 = por %p39, %p40
      %p42 = scmp.ne.s32.totalorder %s28, %s29
      %p43 = scmp.eq.s32.totalorder %s21, 1
      %p44 = por %p42, %p43
      %p46 = scmp.ne.s32.totalorder %s29, %s45
      %p47 = scmp.eq.s32.totalorder %s21, 0
      %p48 = por %p46, %p47
      %s50 = sadd.s32 %s49, 1
      %p53 = scmp.eq.s32.totalorder %s15, 1
      %p54 = scmp.ne.s32.totalorder %s49, %s51
      %p55 = scmp.eq.s32.totalorder %s15, 0
      %p56 = por %p54, %p55
      %p57 = scmp.ne.s32.totalorder %s49, %s51
      %p58 = scmp.eq.s32.totalorder %s20, 1
      %p59 = por %p57, %p58
      %p60 = scmp.ne.s32.totalorder %s51, %s52
      %p61 = scmp.eq.s32.totalorder %s20, 0
      %p62 = por %p60, %p61
      %p63 = scmp.ne.s32.totalorder %s51, %s52
      %p64 = scmp.eq.s32.totalorder %s21, 1
      %p65 = por %p63, %p64
      %p67 = scmp.ne.s32.totalorder %s52, %s66
      %p68 = scmp.eq.s32.totalorder %s21, 0
      %p69 = por %p67, %p68
      %s70 = ssub.s32 %s15, %s22
      %p71 = scmp.eq.s32.totalorder %s70, 0
      %s73 = sadd.s32 %s72, 1
      %s74 = scalar_select %p71, %s72, %s73
      %p77 = pneg %p71
      %p78 = scmp.eq.s32.totalorder %s15, 1
      %p79 = por %p77, %p78
      %p80 = scmp.ne.s32.totalorder %s72, %s75
      %p81 = scmp.eq.s32.totalorder %s15, 0
      %p82 = por %p80, %p81
      %p83 = scmp.ne.s32.totalorder %s72, %s75
      %p84 = scmp.eq.s32.totalorder %s20, 1
      %p85 = por %p83, %p84
      %p86 = scmp.ne.s32.totalorder %s75, %s76
      %p87 = scmp.eq.s32.totalorder %s20, 0
      %p88 = por %p86, %p87
      %p89 = scmp.ne.s32.totalorder %s75, %s76
      %p90 = scmp.eq.s32.totalorder %s21, 1
      %p91 = por %p89, %p90
      %p93 = scmp.ne.s32.totalorder %s76, %s92
      %p94 = scmp.eq.s32.totalorder %s21, 0
      %p95 = por %p93, %p94
      %p96 = scmp.le.s32.totalorder 1, %s15
      %p97 = scmp.lt.s32.totalorder %s15, 3
      %p98 = pnand %p96, %p97
      %p99 = pneg %p98
      // Predicated region
      $region9: #{tpu_custom_call.1} parent=5 // pred_check
        _
      $region10: #{tpu_custom_call.1} parent=5 // pred_check_branch
        %101 = sbr.rel (%p98) target = $region12
      $region11: #{tpu_custom_call.1} parent=5 // pred_region
        %s102 = ssub.s32 %s15, 1
        // Predicated region
        $region13: #{tpu_custom_call.1} parent=11 // pred_check
          %p103 = pneg %p62
        $region14: #{tpu_custom_call.1} parent=11 // pred_check_branch
          %105 = sbr.rel (%p103) target = $region16
        $region15: #{tpu_custom_call.1} parent=11 // pred_region
          %107 = vsyncadd [#allocation6], 0
          %s108 = sshll.u32 %s1, 4
          %s109 = int_to_ptr.hbm [resolvable:$true] %s108
          %s110 = sshll.u32 [#allocation5], 4
          %s111 = int_to_ptr.vmem [resolvable:$true] %s110
          %116 = dma.hbm_to_vmem [thread:$0]  %s109, 1536, %s111, [#allocation6], 384, 384, 24
        $region16: #{tpu_custom_call.1} parent=11 // pred_fallthru
          _
      $region12: #{tpu_custom_call.1} parent=5 // pred_fallthru
        _
      %p117 = scmp.lt.s32.totalorder %s15, 2
      // Predicated region
      $region17: #{tpu_custom_call.1} parent=5 // pred_check
        %p118 = pneg %p117
      $region18: #{tpu_custom_call.1} parent=5 // pred_check_branch
        %120 = sbr.rel (%p118) target = $region20
      $region19: #{tpu_custom_call.1} parent=5 // pred_region
        // Predicated region
        $region21: #{tpu_custom_call.1} parent=19 // pred_check
          %p121 = pneg %p35
        $region22: #{tpu_custom_call.1} parent=19 // pred_check_branch
          %123 = sbr.rel (%p121) target = $region24
        $region23: #{tpu_custom_call.1} parent=19 // pred_region
          %s124 = sand.u32 %s25, 1
          %s125 = scalar_lea.sflag [#allocation3], %s124
          %s126 = sand.u32 %s25, 1
          %s127 = smul.addr %s126, 8
          %s128 = scalar_lea.vmem [#allocation2], %s127
          %130 = vsyncadd %s125, 0
          %s131 = smul.addr %s15, 8
          %s132 = scalar_lea.hbm %s0, %s131
          %s134 = sshll.u32 %s132, 4
          %s135 = int_to_ptr.hbm [resolvable:$true] %s134
          %s136 = sshll.u32 %s128, 4
          %s137 = int_to_ptr.vmem [resolvable:$true] %s136
          %139 = dma.hbm_to_vmem [thread:$0]  %s135, 128, %s137, %s125
        $region24: #{tpu_custom_call.1} parent=19 // pred_fallthru
          _
      $region20: #{tpu_custom_call.1} parent=5 // pred_fallthru
        _
      %p140 = scmp.le.s32.totalorder 1, %s15
      %p141 = scmp.lt.s32.totalorder %s15, 3
      %p142 = pnand %p140, %p141
      %p143 = pneg %p142
      // Predicated region
      $region25: #{tpu_custom_call.1} parent=5 // pred_check
        _
      $region26: #{tpu_custom_call.1} parent=5 // pred_check_branch
        %145 = sbr.rel (%p142) target = $region28
      $region27: #{tpu_custom_call.1} parent=5 // pred_region
        %s146 = ssub.s32 %s15, 1
        %s147 = sand.u32 %s28, 1
        %s148 = scalar_lea.sflag [#allocation3], %s147
        %s149 = sand.u32 %s28, 1
        %s150 = smul.addr %s149, 8
        %s151 = scalar_lea.vmem [#allocation2], %s150
        // Predicated region
        $region29: #{tpu_custom_call.1} parent=27 // pred_check
          %p152 = pneg %p41
        $region30: #{tpu_custom_call.1} parent=27 // pred_check_branch
          %154 = sbr.rel (%p152) target = $region32
        $region31: #{tpu_custom_call.1} parent=27 // pred_region
          %156 = dma.done %s148, 128
        $region32: #{tpu_custom_call.1} parent=27 // pred_fallthru
          _
        // Predicated region
        $region33: #{tpu_custom_call.1} parent=27 // pred_check
          %p157 = pneg %p62
        $region34: #{tpu_custom_call.1} parent=27 // pred_check_branch
          %159 = sbr.rel (%p157) target = $region36
        $region35: #{tpu_custom_call.1} parent=27 // pred_region
          %161 = dma.done [#allocation6], 1536
        $region36: #{tpu_custom_call.1} parent=27 // pred_fallthru
          _
        %s162 = sand.u32 %s28, 1
        %s163 = scalar_lea.sflag [#allocation3], %s162
        %s164 = sand.u32 %s28, 1
        %s165 = smul.addr %s164, 8
        %s166 = scalar_lea.vmem [#allocation2], %s165
        %p167 = pneg %p41
        %p168 = pneg %p38
        %p169 = pneg %p62
        %p170 = pneg %p59
        %p171 = pneg %p88
        %p172 = pneg %p85
        %s173 = sand.u32 %s75, 1
        %s174 = scalar_lea.sflag [#allocation4], %s173
        %s175 = sand.u32 %s75, 1
        %s176 = smul.addr %s175, 8
        %s177 = scalar_lea.vmem [#allocation7], %s176
        %v178 = vld [vmem:[%s151] sm:$0xff]
        %v179 = vld [vmem:[#allocation5] sm:$0xff]
        %v180 = vld [vmem:[#allocation5 + $0x8] sm:$0xff]
        %v181 = vld [vmem:[#allocation5 + $0x10] sm:$0xff]
        %v182 = vld [vmem:[#allocation5 + $0x18] sm:$0xff]
        %v183 = vld [vmem:[#allocation5 + $0x20] sm:$0xff]
        %v184 = vld [vmem:[#allocation5 + $0x28] sm:$0xff]
        %v185 = vld [vmem:[#allocation5 + $0x30] sm:$0xff]
        %v186 = vld [vmem:[#allocation5 + $0x38] sm:$0xff]
        %v187 = vld [vmem:[#allocation5 + $0x40] sm:$0xff]
        %v188 = vld [vmem:[#allocation5 + $0x48] sm:$0xff]
        %v189 = vld [vmem:[#allocation5 + $0x50] sm:$0xff]
        %v190 = vld [vmem:[#allocation5 + $0x58] sm:$0xff]
        %vm191 = vcmask 261120
        %v193 = vsel %vm191, %v178, 0
        %195 = vmatpush.msra.mxu0 0.0
        %196 = vmatpush.msra.mxu0 0.0
        %197 = vmatpush.msra.mxu0 0.0
        %198 = vmatpush.msra.mxu0 0.0
        %199 = vmatpush.msra.mxu0 0.0
        %200 = vmatpush.msra.mxu0 0.0
        %201 = vmatpush.msra.mxu0 0.0
        %202 = vmatpush.msra.mxu0 0.0
        %203 = vmatpush.msra.mxu0 0.0
        %204 = vmatpush.msra.mxu0 0.0
        %205 = vmatpush.msra.mxu0 0.0
        %206 = vmatpush.msra.mxu0 0.0
        %207 = vmatpush.msra.mxu0 %v188
        %208 = vmatpush.msra.mxu0 %v185
        %209 = vmatpush.msra.mxu0 %v182
        %210 = vmatpush.msra.mxu0 %v179
        %211 = vmatmul.f32.gmra.mxu0 %v193
        %v212 = vpop.f32.mrf.mxu0
        %v213 = vadd.f32 0.0, %v212
        %214 = vdwg.mxu0
        %215 = vmatpush.msra.mxu0 0.0
        %216 = vmatpush.msra.mxu0 0.0
        %217 = vmatpush.msra.mxu0 0.0
        %218 = vmatpush.msra.mxu0 0.0
        %219 = vmatpush.msra.mxu0 0.0
        %220 = vmatpush.msra.mxu0 0.0
        %221 = vmatpush.msra.mxu0 0.0
        %222 = vmatpush.msra.mxu0 0.0
        %223 = vmatpush.msra.mxu0 0.0
        %224 = vmatpush.msra.mxu0 0.0
        %225 = vmatpush.msra.mxu0 0.0
        %226 = vmatpush.msra.mxu0 0.0
        %227 = vmatpush.msra.mxu0 %v189
        %228 = vmatpush.msra.mxu0 %v186
        %229 = vmatpush.msra.mxu0 %v183
        %230 = vmatpush.msra.mxu0 %v180
        %231 = vmatmul.f32.gmra.mxu0 %v193
        %v232 = vpop.f32.mrf.mxu0
        %v233 = vadd.f32 0.0, %v232
        %234 = vdwg.mxu0
        %235 = vmatpush.msra.mxu0 0.0
        %236 = vmatpush.msra.mxu0 0.0
        %237 = vmatpush.msra.mxu0 0.0
        %238 = vmatpush.msra.mxu0 0.0
        %239 = vmatpush.msra.mxu0 0.0
        %240 = vmatpush.msra.mxu0 0.0
        %241 = vmatpush.msra.mxu0 0.0
        %242 = vmatpush.msra.mxu0 0.0
        %243 = vmatpush.msra.mxu0 0.0
        %244 = vmatpush.msra.mxu0 0.0
        %245 = vmatpush.msra.mxu0 0.0
        %246 = vmatpush.msra.mxu0 0.0
        %247 = vmatpush.msra.mxu0 %v190
        %248 = vmatpush.msra.mxu0 %v187
        %249 = vmatpush.msra.mxu0 %v184
        %250 = vmatpush.msra.mxu0 %v181
        %251 = vmatmul.f32.gmra.mxu0 %v193
        %v252 = vpop.f32.mrf.mxu0
        %v253 = vadd.f32 0.0, %v252
        %254 = vdwg.mxu0
        %v255 = vmul.f32 %v213, 0.17677669
        %256 = vmatpush.xpose.msra.mxu0 0.0
        %257 = vmatpush.xpose.msra.mxu0 0.0
        %258 = vmatpush.xpose.msra.mxu0 0.0
        %259 = vmatpush.xpose.msra.mxu0 0.0
        %260 = vmatpush.xpose.msra.mxu0 0.0
        %261 = vmatpush.xpose.msra.mxu0 0.0
        %262 = vmatpush.xpose.msra.mxu0 0.0
        %263 = vmatpush.xpose.msra.mxu0 0.0
        %264 = vmatpush.xpose.msra.mxu0 0.0
        %265 = vmatpush.xpose.msra.mxu0 0.0
        %266 = vmatpush.xpose.msra.mxu0 0.0
        %267 = vmatpush.xpose.msra.mxu0 0.0
        %268 = vmatpush.xpose.msra.mxu0 0.0
        %269 = vmatpush.xpose.msra.mxu0 0.0
        %270 = vmatpush.xpose.msra.mxu0 0.0
        %271 = vmatpush.xpose.msra.mxu0 %v255
        %272 = vmatmul.f32.gmra.mxu0 %v233
        %v273 = vpop.f32.mrf.mxu0
        %v274 = vadd.f32 0.0, %v273
        %275 = vdwg.mxu0
        %v276 = vlaneseq
        %v277 = vshrl.u32 %v276, 7
        %v278 = vlaneseq
        %v279 = vand.u32 %v278, 127
        %vm280 = vcmp.gt.s32.totalorder %v277, %v279
        %v281 = vsel %vm280, -inf, %v274
        %vm282 = vcmask 64512
        %v283 = vsel %vm282, %v281, -inf
        %284 = vmax.xlane.f32.xlu0 %v283
        %v285 = vpop.xlane.xlu0 %284
        %v286 = vsub.f32 %v281, %v285
        %v287 = vmul.f32 %v286, 1.442695
        %v288 = vpow.pop %v287
        %v289 = vsel %vm282, %v288, 0.0
        %290 = vadd.xlane.f32.xlu0 %v289
        %v291 = vpop.xlane.xlu0 %290
        %v292 = vrcp.pop %v291
        %v293 = vmul.f32 %v291, %v292
        %v294 = vsub.f32 2.0, %v293
        %v295 = vmul.f32 %v292, %v294
        %v296 = vmul.f32 %v288, %v295
        %297 = vxpose.xlu0.b32.start [1/16] %v296, 128
        %298 = vxpose.xlu0.b32.cont [2/16] 0.0, 128
        %299 = vxpose.xlu0.b32.cont [3/16] 0.0, 128
        %300 = vxpose.xlu0.b32.cont [4/16] 0.0, 128
        %301 = vxpose.xlu0.b32.cont [5/16] 0.0, 128
        %302 = vxpose.xlu0.b32.cont [6/16] 0.0, 128
        %303 = vxpose.xlu0.b32.cont [7/16] 0.0, 128
        %304 = vxpose.xlu0.b32.cont [8/16] 0.0, 128
        %305 = vxpose.xlu0.b32.cont [9/16] 0.0, 128
        %306 = vxpose.xlu0.b32.cont [10/16] 0.0, 128
        %307 = vxpose.xlu0.b32.cont [11/16] 0.0, 128
        %308 = vxpose.xlu0.b32.cont [12/16] 0.0, 128
        %309 = vxpose.xlu0.b32.cont [13/16] 0.0, 128
        %310 = vxpose.xlu0.b32.cont [14/16] 0.0, 128
        %311 = vxpose.xlu0.b32.cont [15/16] 0.0, 128
        %312 = vxpose.xlu0.b32.end [16/16] 0.0, 128
        %v313 = vpop.trf.xlu0
        %v314 = vpop.trf.xlu0
        %v315 = vpop.trf.xlu0
        %v316 = vpop.trf.xlu0
        %v317 = vpop.trf.xlu0
        %v318 = vpop.trf.xlu0
        %v319 = vpop.trf.xlu0
        %v320 = vpop.trf.xlu0
        %v321 = vpop.trf.xlu0
        %v322 = vpop.trf.xlu0
        %v323 = vpop.trf.xlu0
        %v324 = vpop.trf.xlu0
        %v325 = vpop.trf.xlu0
        %v326 = vpop.trf.xlu0
        %v327 = vpop.trf.xlu0
        %v328 = vpop.trf.xlu0
        %v330 = vsel %vm282, %v313, 0
        %332 = vmatpush.msra.mxu0 0.0
        %333 = vmatpush.msra.mxu0 0.0
        %334 = vmatpush.msra.mxu0 0.0
        %335 = vmatpush.msra.mxu0 0.0
        %336 = vmatpush.msra.mxu0 0.0
        %337 = vmatpush.msra.mxu0 0.0
        %338 = vmatpush.msra.mxu0 0.0
        %339 = vmatpush.msra.mxu0 0.0
        %340 = vmatpush.msra.mxu0 0.0
        %341 = vmatpush.msra.mxu0 0.0
        %342 = vmatpush.msra.mxu0 0.0
        %343 = vmatpush.msra.mxu0 0.0
        %344 = vmatpush.msra.mxu0 0.0
        %345 = vmatpush.msra.mxu0 0.0
        %346 = vmatpush.msra.mxu0 0.0
        %347 = vmatpush.msra.mxu0 %v253
        %348 = vmatmul.f32.gmra.mxu0 %v330
        %v349 = vpop.f32.mrf.mxu0
        %v350 = vadd.f32 0.0, %v349
        %351 = vdwg.mxu0
        %352 = vst [vmem:[%s177] sm:$0xff] %v350
        %s353 = sand.u32 %s75, 1
        %s354 = scalar_lea.sflag [#allocation4], %s353
        %s355 = sand.u32 %s75, 1
        %s356 = smul.addr %s355, 8
        %s357 = scalar_lea.vmem [#allocation7], %s356
        // Predicated region
        $region37: #{tpu_custom_call.1} parent=27 // pred_check
          %p358 = pneg %p85
        $region38: #{tpu_custom_call.1} parent=27 // pred_check_branch
          %360 = sbr.rel (%p358) target = $region40
        $region39: #{tpu_custom_call.1} parent=27 // pred_region
          %362 = vsyncadd %s354, 0
          %s363 = smul.addr %s20, 8
          %s364 = scalar_lea.hbm %s2, %s363
          %s366 = sshll.u32 %s357, 4
          %s367 = int_to_ptr.vmem [resolvable:$true] %s366
          %s368 = sshll.u32 %s364, 4
          %s369 = int_to_ptr.hbm [resolvable:$true] %s368
          %371 = dma.vmem_to_hbm [thread:$0]  %s367, 128, %s369, %s354
        $region40: #{tpu_custom_call.1} parent=27 // pred_fallthru
          _
      $region28: #{tpu_custom_call.1} parent=5 // pred_fallthru
        _
      %p372 = scmp.le.s32.totalorder 2, %s15
      // Predicated region
      $region41: #{tpu_custom_call.1} parent=5 // pred_check
        %p373 = pneg %p372
      $region42: #{tpu_custom_call.1} parent=5 // pred_check_branch
        %375 = sbr.rel (%p373) target = $region44
      $region43: #{tpu_custom_call.1} parent=5 // pred_region
        %s376 = ssub.s32 %s15, 2
        // Predicated region
        $region45: #{tpu_custom_call.1} parent=43 // pred_check
          %p377 = pneg %p91
        $region46: #{tpu_custom_call.1} parent=43 // pred_check_branch
          %379 = sbr.rel (%p377) target = $region48
        $region47: #{tpu_custom_call.1} parent=43 // pred_region
          %s380 = sand.u32 %s76, 1
          %s381 = scalar_lea.sflag [#allocation4], %s380
          %s382 = sand.u32 %s76, 1
          %s383 = smul.addr %s382, 8
          %s384 = scalar_lea.vmem [#allocation7], %s383
          %386 = dma.done %s381, 128
        $region48: #{tpu_custom_call.1} parent=43 // pred_fallthru
          _
      $region44: #{tpu_custom_call.1} parent=5 // pred_fallthru
        _
    $region6: #{tpu_custom_call.1} parent=1 // loop_footer
      %s19 = sadd.s32 1, %s15
    $region7: #{tpu_custom_call.1} parent=1 // loop_footer_branch
      %14 = sbr.rel target = $region3
    $region8: #{tpu_custom_call.1} parent=1 // loop_exit
      _
    %387 = vsyncpa [#allocation3], 1
    %s388 = scalar_lea.sflag [#allocation3], 1
    %389 = vsyncpa %s388, 1
    %390 = vsyncpa [#allocation6], 1
    %391 = vsyncpa [#allocation4], 1
    %s392 = scalar_lea.sflag [#allocation4], 1
    %393 = vsyncpa %s392, 1

</llo_original>
